<compile_context>
chip_gen: v6e
topology: v6e:2x2x1
jax: 0.10.0
libtpu: 0.0.40
codegen_flags: <defaults>
</compile_context>

<pallas_src>
import functools

import jax
import jax.numpy as jnp
from jax import lax
from jax.experimental import pallas as pl
from jax.experimental.pallas import tpu as pltpu

_MIB = 1024 * 1024


# ----------------------------- Pallas kernel ----------------------------------
def _olm_tile_kernel(labels_ref, lv_ref, lk_ref, lm_ref, ce_ref, norms_ref):
    """One batch tile.

    labels_ref : (TB, 1) int32   VMEM
    l{v,k,m}   : (TB, C)         VMEM (cast to f32 on tile; bf16 friendly)
    ce_ref     : (1, 3)  f32     per-tile partial CE numerator sums
    norms_ref  : (3, TB) f32     per-row L2 norms, lane-dense layout
    """
    tb, c = lv_ref.shape
    labels = labels_ref[...]                                   # (TB, 1) int32
    col_ids = lax.broadcasted_iota(jnp.int32, (tb, c), 1)      # (TB, C)
    # NOTE: out-of-range labels (<0 or >=C) select nothing -> lab == 0; the
    # PyTorch gather/NLL path would error instead.  Validate labels upstream.
    is_label = col_ids == labels                               # (TB, C) bool

    def one_modality(x_ref):
        # Each modality is processed to completion before the next is touched,
        # so only one (TB, C) f32 working set is live at a time.
        x = x_ref[...].astype(jnp.float32)                     # (TB, C)
        row_max = jnp.max(x, axis=-1, keepdims=True)           # (TB, 1)
        lse = row_max + jnp.log(
            jnp.sum(jnp.exp(x - row_max), axis=-1, keepdims=True))
        lab = jnp.sum(jnp.where(is_label, x, 0.0),
                      axis=-1, keepdims=True)                  # (TB, 1)
        nrm = jnp.sqrt(jnp.sum(x * x, axis=-1, keepdims=True))  # (TB, 1)
        ce = jnp.sum(lse - lab, axis=0, keepdims=True)         # (1, 1)
        return ce, nrm

    ce_v, nv = one_modality(lv_ref)
    ce_k, nk = one_modality(lk_ref)
    ce_m, nm = one_modality(lm_ref)

    ce_ref[...] = jnp.concatenate([ce_v, ce_k, ce_m], axis=-1)   # (1, 3)
    # Lane-dense store: (TB, 3) -> (3, TB) transpose uses the XLU slot (slack
    # here), and the resulting slab stores with unmasked vst.
    norms_ref[...] = jnp.transpose(
        jnp.concatenate([nv, nk, nm], axis=-1), (1, 0))          # (3, TB)


# ----------------------------- VMEM / tile planning ----------------------------
def _vmem_plan(itemsize):
    """Per-generation budgets: (input_buffer_budget, min_tiles, limit_floor, cap)."""
    try:
        info = pltpu.get_tpu_info()
        cap = int(getattr(info, "vmem_capacity_bytes", 128 * _MIB))
    except Exception:
        cap = 64 * _MIB                       # conservative: v7x-class size
    small_vmem = cap <= 64 * _MIB             # v7x: 64 MiB per TensorCore
    in_budget = (16 if small_vmem else 24) * _MIB
    min_tiles = 4 if small_vmem else 2        # v7x: >=2 even steps per TC
    limit_floor = (40 if small_vmem else 64) * _MIB
    return in_budget, min_tiles, limit_floor, cap


def _choose_block_b(B, C, itemsize, in_budget, min_tiles):
    """Largest batch tile fitting the input double-buffer budget.

    Tile is a multiple of 16 (bf16) / 8 (f32) sublanes dividing B, shrunk (if
    cheap) so the grid has at least `min_tiles` steps and an even count.
    """
    align = 16 if itemsize < 4 else 8
    if B % align != 0:
        # TODO(synk): pad B to a multiple of 8/16 in the caller for large odd
        # batches; this single full-extent tile can exceed VMEM there.
        return B
    bytes_per_row = 3 * 2 * C * itemsize          # 3 inputs, double-buffered
    tb_budget = max(align, (in_budget // bytes_per_row) // align * align)
    divisors = [d for d in range(align, B + 1, align) if B % d == 0]
    if not divisors:
        return B
    fit = [d for d in divisors if d <= tb_budget] or divisors[:1]
    tb = fit[-1]
    if B // tb < min_tiles:
        pref = [d for d in fit if B // d >= min_tiles and (B // d) % 2 == 0]
        if pref:
            tb = pref[-1]
    return tb


def _vmem_limit_bytes(block_b, C, itemsize, limit_floor, cap):
    """Explicit scoped-VMEM limit sized from the real footprint."""
    inputs = 3 * 2 * block_b * C * itemsize          # double-buffered inputs
    labels = 2 * block_b * 4                         # int32 labels
    outs = 2 * (3 * block_b + 8 * 128) * 4           # norm slab + CE partials
    temps = 2 * block_b * max(C, 128) * 4            # f32 on-tile temporaries
    need = inputs + labels + outs + temps + 2 * _MIB
    return int(min(max(limit_floor, need), cap - 4 * _MIB))


# ----------------------------- forward (jitted) ---------------------------------
@functools.partial(jax.jit,
                   static_argnames=("block_b", "vmem_limit", "capture_initial"))
def _olm_forward(logits_v, logits_k, logit_mt, labels2d, weights, initial_loss,
                 block_b, vmem_limit, capture_initial):
    B, C = logits_v.shape
    nblk = B // block_b

    row_spec = pl.BlockSpec((block_b, C), lambda i: (i, 0))
    lab_spec = pl.BlockSpec((block_b, 1), lambda i: (i, 0))
    ce_spec = pl.BlockSpec((None, 1, 3), lambda i: (i, 0, 0))
    nrm_spec = pl.BlockSpec((None, 3, block_b), lambda i: (i, 0, 0))

    out_shapes = (
        jax.ShapeDtypeStruct((nblk, 1, 3), jnp.float32),        # CE partials
        jax.ShapeDtypeStruct((nblk, 3, block_b), jnp.float32),  # L2 norms
    )

    ce_part, norms_part = pl.pallas_call(
        _olm_tile_kernel,
        out_shape=out_shapes,
        grid_spec=pltpu.PrefetchScalarGridSpec(
            num_scalar_prefetch=0,
            grid=(nblk,),
            in_specs=[lab_spec, row_spec, row_spec, row_spec],
            out_specs=(ce_spec, nrm_spec),
        ),
        compiler_params=pltpu.CompilerParams(
            dimension_semantics=("parallel",),
            vmem_limit_bytes=vmem_limit),
    )(labels2d, logits_v, logits_k, logit_mt)

    # --- tiny O(B*3) epilogue in plain JAX (needs full-batch CE sums) ---------
    losses = jnp.sum(ce_part, axis=(0, 1)) / B                  # (3,) mean CE
    initial = losses if capture_initial else initial_loss       # iteration == 0
    total = jnp.sum(weights * losses)

    logits_norm = (jnp.transpose(norms_part, (0, 2, 1)).reshape(B, 3)
                   * weights[None, :])                          # (B, 3)
    loss_ratio = losses / initial
    rt = loss_ratio / jnp.mean(loss_ratio)
    constant = jnp.mean(logits_norm, axis=-1, keepdims=True) * rt[None, :]
    lnorm = jnp.sum(jnp.abs(logits_norm - constant))
    return total, losses, lnorm, initial


# ----------------------------- module wrapper ----------------------------------
class OLMLoss:
    """Functional re-implementation of the PyTorch OLM_Loss forward pass."""

    def __init__(self, block_b=None):
        self.weights = jnp.ones((3,), dtype=jnp.float32)   # [1.0, 1.0, 1.0]
        self.initial_loss = None                           # (3,) after iter 0
        self.block_b = block_b
        # TODO(synk): torch.optim.Adam([self.weights]) / requires_grad is
        # training glue with no forward-pass role; omitted.

    def __call__(self, logits_v, logits_k, logit_mt, labels, iteration):
        B, C = logits_v.shape
        labels2d = labels.astype(jnp.int32).reshape(B, 1)
        itemsize = int(jnp.dtype(logits_v.dtype).itemsize)

        in_budget, min_tiles, limit_floor, cap = _vmem_plan(itemsize)
        align = 16 if itemsize < 4 else 8
        block_b = self.block_b
        if (block_b is None or B % block_b != 0
                or (block_b % align != 0 and block_b != B)):
            block_b = _choose_block_b(B, C, itemsize, in_budget, min_tiles)
        vmem_limit = _vmem_limit_bytes(block_b, C, itemsize, limit_floor, cap)

        capture_initial = (iteration == 0) or (self.initial_loss is None)
        init = self.initial_loss if self.initial_loss is not None \
            else jnp.ones((3,), jnp.float32)

        total, losses, lnorm, new_init = _olm_forward(
            logits_v, logits_k, logit_mt, labels2d, self.weights, init,
            block_b, vmem_limit, capture_initial)
        self.initial_loss = new_init   # stateful bookkeeping, like torch module

        # Device scalars (no .item() host syncs on the hot path).
        loss_dict = {
            'vision_cls': losses[0],
            'keypoints_cls': losses[1],
            'classification_loss': losses[2],
            'logitsnorm_loss': lnorm,
            'vision_w': self.weights[0],
            'keypoints_w': self.weights[1],
            'fusion_w': self.weights[2],
            'iteration': iteration,
        }
        return total, loss_dict, lnorm


# ----------------------------- pure-JAX reference ------------------------------
def _ref_forward(logits_v, logits_k, logit_mt, labels, iteration, weights,
                 initial_loss):
    def ce(x):
        logp = jax.nn.log_softmax(x.astype(jnp.float32), axis=-1)
        return -jnp.mean(logp[jnp.arange(x.shape[0]), labels])

    losses = jnp.stack([ce(logits_v), ce(logits_k), ce(logit_mt)])        # (3,)
    initial = losses if iteration == 0 else initial_loss
    total = jnp.sum(weights * losses)
    logits = jnp.stack([logits_v, logits_k, logit_mt]).astype(jnp.float32)
    logits_norm = jnp.stack(
        [weights[i] * jnp.linalg.norm(logits[i], axis=-1) for i in range(3)],
        axis=-1)
    loss_ratio = losses / initial
    rt = loss_ratio / jnp.mean(loss_ratio)
    constant = logits_norm.mean(-1)[:, None] * rt[None, :]
    lnorm = jnp.sum(jnp.abs(logits_norm - constant))
    return total, losses, lnorm, initial


def _run_case(dtype, rtol, atol):
    key = jax.random.PRNGKey(0)
    B, C = 128, 256
    kv, kk, km, kl = jax.random.split(key, 4)
    logits_v = jax.random.normal(kv, (B, C), dtype=jnp.float32).astype(dtype)
    logits_k = jax.random.normal(kk, (B, C), dtype=jnp.float32).astype(dtype)
    logit_mt = jax.random.normal(km, (B, C), dtype=jnp.float32).astype(dtype)
    labels = jax.random.randint(kl, (B,), 0, C, dtype=jnp.int32)

    mod = OLMLoss()                      # auto tile selection (multi-tile grid)
    w = jnp.ones((3,), jnp.float32)
    ref_init = jnp.ones((3,), jnp.float32)
    for it in range(2):   # iter 0 captures initial_loss; iter 1 reuses state
        loss, loss_dict, lnorm = mod(logits_v, logits_k, logit_mt, labels, it)
        jax.block_until_ready((loss, lnorm))

        r_total, r_losses, r_lnorm, ref_init = _ref_forward(
            logits_v, logits_k, logit_mt, labels, it, w, ref_init)

        assert jnp.allclose(loss, r_total, rtol=rtol, atol=atol)
        assert jnp.allclose(lnorm, r_lnorm, rtol=rtol, atol=atol)
        assert jnp.allclose(mod.initial_loss, ref_init, rtol=rtol, atol=atol)
        got_losses = jnp.stack([loss_dict['vision_cls'],
                                loss_dict['keypoints_cls'],
                                loss_dict['classification_loss']])
        assert jnp.allclose(got_losses, r_losses, rtol=rtol, atol=atol)


if __name__ == "__main__":
    _run_case(jnp.float32, rtol=1e-4, atol=1e-4)    # f32 path (8-row align)
    _run_case(jnp.bfloat16, rtol=3e-4, atol=3e-4)   # bf16 path (16-row align)
    print("KERNEL_OK")
</pallas_src>

<mosaic_0001>
module attributes {stable_mosaic.version = 11 : i64} {
  func.func @_olm_tile_kernel(%arg0: i32, %arg1: memref<32x1xi32, #tpu.memory_space<vmem>>, %arg2: memref<32x256xf32, #tpu.memory_space<vmem>>, %arg3: memref<32x256xf32, #tpu.memory_space<vmem>>, %arg4: memref<32x256xf32, #tpu.memory_space<vmem>>, %arg5: memref<1x1x3xf32, #tpu.memory_space<vmem>>, %arg6: memref<1x3x32xf32, #tpu.memory_space<vmem>>) attributes {dimension_semantics = [#tpu.dimension_semantics<parallel>], iteration_bounds = array<i64: 4>, scalar_prefetch = 0 : i64, scratch_operands = 0 : i64, tpu.core_type = #tpu.core_type<tc>, window_params = [{transform_indices = @transform_0, window_bounds = array<i64: 32, 1>}, {transform_indices = @transform_1, window_bounds = array<i64: 32, 256>}, {transform_indices = @transform_2, window_bounds = array<i64: 32, 256>}, {transform_indices = @transform_3, window_bounds = array<i64: 32, 256>}, {transform_indices = @transform_4, window_bounds = array<i64: 1, 1, 3>}, {transform_indices = @transform_5, window_bounds = array<i64: 1, 3, 32>}]} {
    %c0 = arith.constant 0 : index
    %c0_0 = arith.constant 0 : index
    %0 = vector.load %arg1[%c0, %c0_0] : memref<32x1xi32, #tpu.memory_space<vmem>>, vector<32x1xi32>
    %1 = tpu.iota {dimensions = array<i32: 1>} : vector<32x256xi32>
    %2 = vector.broadcast %0 : vector<32x1xi32> to vector<32x256xi32>
    %3 = arith.cmpi eq, %1, %2 : vector<32x256xi32>
    %c0_1 = arith.constant 0 : index
    %c0_2 = arith.constant 0 : index
    %4 = vector.load %arg2[%c0_1, %c0_2] : memref<32x256xf32, #tpu.memory_space<vmem>>, vector<32x256xf32>
    %cst = arith.constant dense<0xFF800000> : vector<32xf32>
    %5 = vector.multi_reduction <maximumf>, %4, %cst [1] : vector<32x256xf32> to vector<32xf32>
    %6 = vector.shape_cast %5 : vector<32xf32> to vector<32x1xf32>
    %7 = vector.broadcast %6 : vector<32x1xf32> to vector<32x256xf32>
    %8 = arith.subf %4, %7 : vector<32x256xf32>
    %9 = math.exp %8 : vector<32x256xf32>
    %cst_3 = arith.constant dense<0.000000e+00> : vector<32xf32>
    %10 = vector.multi_reduction <add>, %9, %cst_3 [1] : vector<32x256xf32> to vector<32xf32>
    %11 = vector.shape_cast %10 : vector<32xf32> to vector<32x1xf32>
    %12 = math.log %11 : vector<32x1xf32>
    %13 = arith.addf %6, %12 : vector<32x1xf32>
    %cst_4 = arith.constant 0.000000e+00 : f32
    %14 = vector.broadcast %cst_4 : f32 to vector<32x256xf32>
    %15 = arith.select %3, %4, %14 : vector<32x256xi1>, vector<32x256xf32>
    %cst_5 = arith.constant dense<0.000000e+00> : vector<32xf32>
    %16 = vector.multi_reduction <add>, %15, %cst_5 [1] : vector<32x256xf32> to vector<32xf32>
    %17 = vector.shape_cast %16 : vector<32xf32> to vector<32x1xf32>
    %18 = arith.mulf %4, %4 : vector<32x256xf32>
    %cst_6 = arith.constant dense<0.000000e+00> : vector<32xf32>
    %19 = vector.multi_reduction <add>, %18, %cst_6 [1] : vector<32x256xf32> to vector<32xf32>
    %20 = vector.shape_cast %19 : vector<32xf32> to vector<32x1xf32>
    %21 = math.sqrt %20 : vector<32x1xf32>
    %22 = arith.subf %13, %17 : vector<32x1xf32>
    %cst_7 = arith.constant dense<0.000000e+00> : vector<1xf32>
    %23 = vector.multi_reduction <add>, %22, %cst_7 [0] : vector<32x1xf32> to vector<1xf32>
    %24 = vector.shape_cast %23 : vector<1xf32> to vector<1x1xf32>
    %c0_8 = arith.constant 0 : index
    %c0_9 = arith.constant 0 : index
    %25 = vector.load %arg3[%c0_8, %c0_9] : memref<32x256xf32, #tpu.memory_space<vmem>>, vector<32x256xf32>
    %cst_10 = arith.constant dense<0xFF800000> : vector<32xf32>
    %26 = vector.multi_reduction <maximumf>, %25, %cst_10 [1] : vector<32x256xf32> to vector<32xf32>
    %27 = vector.shape_cast %26 : vector<32xf32> to vector<32x1xf32>
    %28 = vector.broadcast %27 : vector<32x1xf32> to vector<32x256xf32>
    %29 = arith.subf %25, %28 : vector<32x256xf32>
    %30 = math.exp %29 : vector<32x256xf32>
    %cst_11 = arith.constant dense<0.000000e+00> : vector<32xf32>
    %31 = vector.multi_reduction <add>, %30, %cst_11 [1] : vector<32x256xf32> to vector<32xf32>
    %32 = vector.shape_cast %31 : vector<32xf32> to vector<32x1xf32>
    %33 = math.log %32 : vector<32x1xf32>
    %34 = arith.addf %27, %33 : vector<32x1xf32>
    %cst_12 = arith.constant 0.000000e+00 : f32
    %35 = vector.broadcast %cst_12 : f32 to vector<32x256xf32>
    %36 = arith.select %3, %25, %35 : vector<32x256xi1>, vector<32x256xf32>
    %cst_13 = arith.constant dense<0.000000e+00> : vector<32xf32>
    %37 = vector.multi_reduction <add>, %36, %cst_13 [1] : vector<32x256xf32> to vector<32xf32>
    %38 = vector.shape_cast %37 : vector<32xf32> to vector<32x1xf32>
    %39 = arith.mulf %25, %25 : vector<32x256xf32>
    %cst_14 = arith.constant dense<0.000000e+00> : vector<32xf32>
    %40 = vector.multi_reduction <add>, %39, %cst_14 [1] : vector<32x256xf32> to vector<32xf32>
    %41 = vector.shape_cast %40 : vector<32xf32> to vector<32x1xf32>
    %42 = math.sqrt %41 : vector<32x1xf32>
    %43 = arith.subf %34, %38 : vector<32x1xf32>
    %cst_15 = arith.constant dense<0.000000e+00> : vector<1xf32>
    %44 = vector.multi_reduction <add>, %43, %cst_15 [0] : vector<32x1xf32> to vector<1xf32>
    %45 = vector.shape_cast %44 : vector<1xf32> to vector<1x1xf32>
    %c0_16 = arith.constant 0 : index
    %c0_17 = arith.constant 0 : index
    %46 = vector.load %arg4[%c0_16, %c0_17] : memref<32x256xf32, #tpu.memory_space<vmem>>, vector<32x256xf32>
    %cst_18 = arith.constant dense<0xFF800000> : vector<32xf32>
    %47 = vector.multi_reduction <maximumf>, %46, %cst_18 [1] : vector<32x256xf32> to vector<32xf32>
    %48 = vector.shape_cast %47 : vector<32xf32> to vector<32x1xf32>
    %49 = vector.broadcast %48 : vector<32x1xf32> to vector<32x256xf32>
    %50 = arith.subf %46, %49 : vector<32x256xf32>
    %51 = math.exp %50 : vector<32x256xf32>
    %cst_19 = arith.constant dense<0.000000e+00> : vector<32xf32>
    %52 = vector.multi_reduction <add>, %51, %cst_19 [1] : vector<32x256xf32> to vector<32xf32>
    %53 = vector.shape_cast %52 : vector<32xf32> to vector<32x1xf32>
    %54 = math.log %53 : vector<32x1xf32>
    %55 = arith.addf %48, %54 : vector<32x1xf32>
    %cst_20 = arith.constant 0.000000e+00 : f32
    %56 = vector.broadcast %cst_20 : f32 to vector<32x256xf32>
    %57 = arith.select %3, %46, %56 : vector<32x256xi1>, vector<32x256xf32>
    %cst_21 = arith.constant dense<0.000000e+00> : vector<32xf32>
    %58 = vector.multi_reduction <add>, %57, %cst_21 [1] : vector<32x256xf32> to vector<32xf32>
    %59 = vector.shape_cast %58 : vector<32xf32> to vector<32x1xf32>
    %60 = arith.mulf %46, %46 : vector<32x256xf32>
    %cst_22 = arith.constant dense<0.000000e+00> : vector<32xf32>
    %61 = vector.multi_reduction <add>, %60, %cst_22 [1] : vector<32x256xf32> to vector<32xf32>
    %62 = vector.shape_cast %61 : vector<32xf32> to vector<32x1xf32>
    %63 = math.sqrt %62 : vector<32x1xf32>
    %64 = arith.subf %55, %59 : vector<32x1xf32>
    %cst_23 = arith.constant dense<0.000000e+00> : vector<1xf32>
    %65 = vector.multi_reduction <add>, %64, %cst_23 [0] : vector<32x1xf32> to vector<1xf32>
    %66 = vector.shape_cast %65 : vector<1xf32> to vector<1x1xf32>
    %67 = tpu.concatenate %24, %45, %66 in 1 : vector<1x1xf32>, vector<1x1xf32>, vector<1x1xf32> -> vector<1x3xf32>
    %c0_24 = arith.constant 0 : index
    %c0_25 = arith.constant 0 : index
    %c0_26 = arith.constant 0 : index
    %68 = vector.load %arg5[%c0_24, %c0_25, %c0_26] : memref<1x1x3xf32, #tpu.memory_space<vmem>>, vector<1x1x3xf32>
    %69 = vector.shape_cast %68 : vector<1x1x3xf32> to vector<1x3xf32>
    %70 = vector.shape_cast %67 : vector<1x3xf32> to vector<1x1x3xf32>
    tpu.vector_store %arg5[%c0_24, %c0_25, %c0_26], %70 {strides = array<i32>} : memref<1x1x3xf32, #tpu.memory_space<vmem>>, vector<1x1x3xf32>,
    %71 = tpu.concatenate %21, %42, %63 in 1 : vector<32x1xf32>, vector<32x1xf32>, vector<32x1xf32> -> vector<32x3xf32>
    %72 = tpu.transpose %71, [1, 0] : vector<32x3xf32> -> vector<3x32xf32>
    %c0_27 = arith.constant 0 : index
    %c0_28 = arith.constant 0 : index
    %c0_29 = arith.constant 0 : index
    %73 = vector.load %arg6[%c0_27, %c0_28, %c0_29] : memref<1x3x32xf32, #tpu.memory_space<vmem>>, vector<1x3x32xf32>
    %74 = vector.shape_cast %73 : vector<1x3x32xf32> to vector<3x32xf32>
    %75 = vector.shape_cast %72 : vector<3x32xf32> to vector<1x3x32xf32>
    tpu.vector_store %arg6[%c0_27, %c0_28, %c0_29], %75 {strides = array<i32>} : memref<1x3x32xf32, #tpu.memory_space<vmem>>, vector<1x3x32xf32>,
    return
  }
  func.func @transform_0(%arg0: i32) -> (i32, i32) {
    %c0_i32 = arith.constant 0 : i32
    %c0_i32_0 = arith.constant 0 : i32
    return %arg0, %c0_i32 : i32, i32
  }
  func.func @transform_1(%arg0: i32) -> (i32, i32) {
    %c0_i32 = arith.constant 0 : i32
    %c0_i32_0 = arith.constant 0 : i32
    return %arg0, %c0_i32 : i32, i32
  }
  func.func @transform_2(%arg0: i32) -> (i32, i32) {
    %c0_i32 = arith.constant 0 : i32
    %c0_i32_0 = arith.constant 0 : i32
    return %arg0, %c0_i32 : i32, i32
  }
  func.func @transform_3(%arg0: i32) -> (i32, i32) {
    %c0_i32 = arith.constant 0 : i32
    %c0_i32_0 = arith.constant 0 : i32
    return %arg0, %c0_i32 : i32, i32
  }
  func.func @transform_4(%arg0: i32) -> (i32, i32, i32) {
    %c0_i32 = arith.constant 0 : i32
    %c0_i32_0 = arith.constant 0 : i32
    %c0_i32_1 = arith.constant 0 : i32
    return %arg0, %c0_i32, %c0_i32_0 : i32, i32, i32
  }
  func.func @transform_5(%arg0: i32) -> (i32, i32, i32) {
    %c0_i32 = arith.constant 0 : i32
    %c0_i32_0 = arith.constant 0 : i32
    %c0_i32_1 = arith.constant 0 : i32
    return %arg0, %c0_i32, %c0_i32_0 : i32, i32, i32
  }
}

</mosaic_0001>

<llo_original>
// kernel: _olm_forward.1
$region0: #{_olm_forward.1}
  #allocation0 [shape = 'u32[]', space=smem, size = 0x4, offset = 0x4, fixed_abs, tag = 'smem constant byte address 0x4 - core index']
  #allocation1 [shape = 'u32[144,128]{1,0:T(1,128)}', space=vmem, size = 0x12000, scoped, tag = 'internal scratch']
  %s0 = inlined_call_operand.vmem [shape: s32[128,1], index: 0, kind: input, shape index: {}]
  %s1 = inlined_call_operand.hbm [shape: f32[128,256], index: 1, kind: input, shape index: {}]
  %s2 = inlined_call_operand.hbm [shape: f32[128,256], index: 2, kind: input, shape index: {}]
  %s3 = inlined_call_operand.hbm [shape: f32[128,256], index: 3, kind: input, shape index: {}]
  %s4 = inlined_call_operand.vmem [shape: f32[4,1,3], index: 4, kind: output, shape index: {0}]
  %s5 = inlined_call_operand.vmem [shape: f32[4,3,32], index: 5, kind: output, shape index: {1}]
  %6 = xla_tuple %s4, %s5
  %s7 = sld [smem:[#allocation0]]
  $region69: #{_olm_forward.1} parent=0
    _
  %s9 = ssub.s32 1, %s7
  %s10 = scalar_select 0, %s9, %s7
  $region1: #{_olm_forward.1} parent=0
    #allocation2 [shape = 'u8[65536]{0}', space=vmem, size = 0x10000, scoped, tag = 'input window, operand 1']
    #allocation3 [shape = 's32[2]{0}', space=sflag, size = 0x8, scoped, tag = 'scoped memory for _olm_forward.1']
    #allocation4 [shape = 'u8[65536]{0}', space=vmem, size = 0x10000, scoped, tag = 'input window, operand 2']
    #allocation5 [shape = 's32[2]{0}', space=sflag, size = 0x8, scoped, tag = 'scoped memory for _olm_forward.1']
    #allocation6 [shape = 'u8[65536]{0}', space=vmem, size = 0x10000, scoped, tag = 'input window, operand 3']
    %11 = vsyncpa [#allocation3], 0
    %s12 = scalar_lea.sflag [#allocation3], 1
    %13 = vsyncpa %s12, 0
    %14 = vsyncpa [#allocation5], 0
    %s15 = scalar_lea.sflag [#allocation5], 1
    %16 = vsyncpa %s15, 0
    loop: start=0, step=1, limit=6
    $region2: #{_olm_forward.1} parent=1 // loop_pre_header
      _
    $region3: #{_olm_forward.1} parent=1 // loop_header
      %s18 = sphi 0, %s22
      %p19 = scmp.ge.s32.totalorder %s18, 6
      %s28 = sphi 0, %s30
      %s31 = sphi 0, %s28
      %s32 = sphi 0, %s31
      %s48 = sphi 0, %s32
      %s54 = sphi 0, %s56
      %s57 = sphi 0, %s54
      %s58 = sphi 0, %s57
      %s74 = sphi 0, %s58
      %s80 = sphi 0, %s82
      %s83 = sphi 0, %s80
      %s84 = sphi 0, %s83
      %s100 = sphi 0, %s84
      %s106 = sphi 0, %s108
      %s109 = sphi 0, %s106
      %s110 = sphi 0, %s109
      %s126 = sphi 0, %s110
      %s132 = sphi 0, %s134
      %s135 = sphi 0, %s132
      %s136 = sphi 0, %s135
      %s152 = sphi 0, %s136
      %s158 = sphi 0, %s160
      %s161 = sphi 0, %s158
      %s162 = sphi 0, %s161
      %s178 = sphi 0, %s162
    $region4: #{_olm_forward.1} parent=1 // loop_header_branch
      %21 = sbr.rel (%p19) target = $region8
    $region5: #{_olm_forward.1} parent=1 // loop_body
      %s23 = ssub.s32 %s18, 1
      %s24 = ssub.s32 %s18, 2
      %s25 = sadd.s32 %s18, 1
      %s26 = ssub.s32 %s18, %s25
      %p27 = scmp.eq.s32.totalorder %s26, 0
      %s29 = sadd.s32 %s28, 1
      %s30 = scalar_select %p27, %s28, %s29
      %p33 = pneg %p27
      %p34 = scmp.eq.s32.totalorder %s18, 3
      %p35 = por %p33, %p34
      %p36 = scmp.ne.s32.totalorder %s28, %s31
      %p37 = scmp.eq.s32.totalorder %s18, 0
      %p38 = por %p36, %p37
      %p39 = scmp.ne.s32.totalorder %s28, %s31
      %p40 = scmp.eq.s32.totalorder %s23, 3
      %p41 = por %p39, %p40
      %p42 = scmp.ne.s32.totalorder %s31, %s32
      %p43 = scmp.eq.s32.totalorder %s23, 0
      %p44 = por %p42, %p43
      %p45 = scmp.ne.s32.totalorder %s31, %s32
      %p46 = scmp.eq.s32.totalorder %s24, 3
      %p47 = por %p45, %p46
      %p49 = scmp.ne.s32.totalorder %s32, %s48
      %p50 = scmp.eq.s32.totalorder %s24, 0
      %p51 = por %p49, %p50
      %s52 = ssub.s32 %s18, %s25
      %p53 = scmp.eq.s32.totalorder %s52, 0
      %s55 = sadd.s32 %s54, 1
      %s56 = scalar_select %p53, %s54, %s55
      %p59 = pneg %p53
      %p60 = scmp.eq.s32.totalorder %s18, 3
      %p61 = por %p59, %p60
      %p62 = scmp.ne.s32.totalorder %s54, %s57
      %p63 = scmp.eq.s32.totalorder %s18, 0
      %p64 = por %p62, %p63
      %p65 = scmp.ne.s32.totalorder %s54, %s57
      %p66 = scmp.eq.s32.totalorder %s23, 3
      %p67 = por %p65, %p66
      %p68 = scmp.ne.s32.totalorder %s57, %s58
      %p69 = scmp.eq.s32.totalorder %s23, 0
      %p70 = por %p68, %p69
      %p71 = scmp.ne.s32.totalorder %s57, %s58
      %p72 = scmp.eq.s32.totalorder %s24, 3
      %p73 = por %p71, %p72
      %p75 = scmp.ne.s32.totalorder %s58, %s74
      %p76 = scmp.eq.s32.totalorder %s24, 0
      %p77 = por %p75, %p76
      %s78 = ssub.s32 %s18, %s25
      %p79 = scmp.eq.s32.totalorder %s78, 0
      %s81 = sadd.s32 %s80, 1
      %s82 = scalar_select %p79, %s80, %s81
      %p85 = pneg %p79
      %p86 = scmp.eq.s32.totalorder %s18, 3
      %p87 = por %p85, %p86
      %p88 = scmp.ne.s32.totalorder %s80, %s83
      %p89 = scmp.eq.s32.totalorder %s18, 0
      %p90 = por %p88, %p89
      %p91 = scmp.ne.s32.totalorder %s80, %s83
      %p92 = scmp.eq.s32.totalorder %s23, 3
      %p93 = por %p91, %p92
      %p94 = scmp.ne.s32.totalorder %s83, %s84
      %p95 = scmp.eq.s32.totalorder %s23, 0
      %p96 = por %p94, %p95
      %p97 = scmp.ne.s32.totalorder %s83, %s84
      %p98 = scmp.eq.s32.totalorder %s24, 3
      %p99 = por %p97, %p98
      %p101 = scmp.ne.s32.totalorder %s84, %s100
      %p102 = scmp.eq.s32.totalorder %s24, 0
      %p103 = por %p101, %p102
      %s104 = ssub.s32 %s18, %s25
      %p105 = scmp.eq.s32.totalorder %s104, 0
      %s107 = sadd.s32 %s106, 1
      %s108 = scalar_select %p105, %s106, %s107
      %p111 = pneg %p105
      %p112 = scmp.eq.s32.totalorder %s18, 3
      %p113 = por %p111, %p112
      %p114 = scmp.ne.s32.totalorder %s106, %s109
      %p115 = scmp.eq.s32.totalorder %s18, 0
      %p116 = por %p114, %p115
      %p117 = scmp.ne.s32.totalorder %s106, %s109
      %p118 = scmp.eq.s32.totalorder %s23, 3
      %p119 = por %p117, %p118
      %p120 = scmp.ne.s32.totalorder %s109, %s110
      %p121 = scmp.eq.s32.totalorder %s23, 0
      %p122 = por %p120, %p121
      %p123 = scmp.ne.s32.totalorder %s109, %s110
      %p124 = scmp.eq.s32.totalorder %s24, 3
      %p125 = por %p123, %p124
      %p127 = scmp.ne.s32.totalorder %s110, %s126
      %p128 = scmp.eq.s32.totalorder %s24, 0
      %p129 = por %p127, %p128
      %s130 = ssub.s32 %s18, %s25
      %p131 = scmp.eq.s32.totalorder %s130, 0
      %s133 = sadd.s32 %s132, 1
      %s134 = scalar_select %p131, %s132, %s133
      %p137 = pneg %p131
      %p138 = scmp.eq.s32.totalorder %s18, 3
      %p139 = por %p137, %p138
      %p140 = scmp.ne.s32.totalorder %s132, %s135
      %p141 = scmp.eq.s32.totalorder %s18, 0
      %p142 = por %p140, %p141
      %p143 = scmp.ne.s32.totalorder %s132, %s135
      %p144 = scmp.eq.s32.totalorder %s23, 3
      %p145 = por %p143, %p144
      %p146 = scmp.ne.s32.totalorder %s135, %s136
      %p147 = scmp.eq.s32.totalorder %s23, 0
      %p148 = por %p146, %p147
      %p149 = scmp.ne.s32.totalorder %s135, %s136
      %p150 = scmp.eq.s32.totalorder %s24, 3
      %p151 = por %p149, %p150
      %p153 = scmp.ne.s32.totalorder %s136, %s152
      %p154 = scmp.eq.s32.totalorder %s24, 0
      %p155 = por %p153, %p154
      %s156 = ssub.s32 %s18, %s25
      %p157 = scmp.eq.s32.totalorder %s156, 0
      %s159 = sadd.s32 %s158, 1
      %s160 = scalar_select %p157, %s158, %s159
      %p163 = pneg %p157
      %p164 = scmp.eq.s32.totalorder %s18, 3
      %p165 = por %p163, %p164
      %p166 = scmp.ne.s32.totalorder %s158, %s161
      %p167 = scmp.eq.s32.totalorder %s18, 0
      %p168 = por %p166, %p167
      %p169 = scmp.ne.s32.totalorder %s158, %s161
      %p170 = scmp.eq.s32.totalorder %s23, 3
      %p171 = por %p169, %p170
      %p172 = scmp.ne.s32.totalorder %s161, %s162
      %p173 = scmp.eq.s32.totalorder %s23, 0
      %p174 = por %p172, %p173
      %p175 = scmp.ne.s32.totalorder %s161, %s162
      %p176 = scmp.eq.s32.totalorder %s24, 3
      %p177 = por %p175, %p176
      %p179 = scmp.ne.s32.totalorder %s162, %s178
      %p180 = scmp.eq.s32.totalorder %s24, 0
      %p181 = por %p179, %p180
      %p182 = scmp.le.s32.totalorder 1, %s18
      %p183 = scmp.lt.s32.totalorder %s18, 5
      %p184 = pnand %p182, %p183
      %p185 = pneg %p184
      // Predicated region
      $region9: #{_olm_forward.1} parent=5 // pred_check
        _
      $region10: #{_olm_forward.1} parent=5 // pred_check_branch
        %187 = sbr.rel (%p184) target = $region12
      $region11: #{_olm_forward.1} parent=5 // pred_region
        %s188 = ssub.s32 %s18, 1
      $region12: #{_olm_forward.1} parent=5 // pred_fallthru
        _
      %p189 = scmp.lt.s32.totalorder %s18, 4
      // Predicated region
      $region13: #{_olm_forward.1} parent=5 // pred_check
        %p190 = pneg %p189
      $region14: #{_olm_forward.1} parent=5 // pred_check_branch
        %192 = sbr.rel (%p190) target = $region16
      $region15: #{_olm_forward.1} parent=5 // pred_region
        // Predicated region
        $region17: #{_olm_forward.1} parent=15 // pred_check
          %p193 = pneg %p38
        $region18: #{_olm_forward.1} parent=15 // pred_check_branch
          %195 = sbr.rel (%p193) target = $region20
        $region19: #{_olm_forward.1} parent=15 // pred_region
          %s196 = smul.u32 4, %s18
          %p197 = scmp.lt.s32.totalorder %s196, 15
          %s198 = scalar_select %p197, %s196, 15
          %s199 = smul.addr %s198, 8
          %s200 = scalar_lea.vmem %s0, %s199
          %s201 = smul.u32 4, %s18
        $region20: #{_olm_forward.1} parent=15 // pred_fallthru
          _
        // Predicated region
        $region21: #{_olm_forward.1} parent=15 // pred_check
          %p202 = pneg %p64
        $region22: #{_olm_forward.1} parent=15 // pred_check_branch
          %204 = sbr.rel (%p202) target = $region24
        $region23: #{_olm_forward.1} parent=15 // pred_region
          %s205 = sand.u32 %s54, 1
          %s206 = scalar_lea.sflag [#allocation3], %s205
          %s207 = sand.u32 %s54, 1
          %s208 = smul.addr %s207, 64
          %s209 = scalar_lea.vmem [#allocation2], %s208
          %s210 = smul.u32 4, %s18
          %s212 = ssub.s32 1024, 1024
          %213 = vsyncadd %s206, %s212
          %s214 = smul.addr %s210, 2
          %s215 = smul.addr %s214, 128
          %s216 = scalar_lea.hbm %s1, %s215
          %s217 = sshll.u32 %s209, 4
          %s218 = int_to_ptr.vmem [resolvable:$true] %s217
          %223 = dma.hbm_to_vmem [thread:$0]  %s216, 1024, %s218, %s206, 256, 256, 16
        $region24: #{_olm_forward.1} parent=15 // pred_fallthru
          _
        // Predicated region
        $region25: #{_olm_forward.1} parent=15 // pred_check
          %p224 = pneg %p90
        $region26: #{_olm_forward.1} parent=15 // pred_check_branch
          %226 = sbr.rel (%p224) target = $region28
        $region27: #{_olm_forward.1} parent=15 // pred_region
          %s227 = sand.u32 %s18, 1
          %s228 = scalar_lea.sflag [#allocation5], %s227
          %s229 = sand.u32 %s80, 1
          %s230 = smul.addr %s229, 64
          %s231 = scalar_lea.vmem [#allocation4], %s230
          %s232 = smul.u32 4, %s18
          %s234 = ssub.s32 1024, 1024
          %235 = vsyncadd %s228, %s234
          %s236 = smul.addr %s232, 2
          %s237 = smul.addr %s236, 128
          %s238 = scalar_lea.hbm %s2, %s237
          %s239 = sshll.u32 %s231, 4
          %s240 = int_to_ptr.vmem [resolvable:$true] %s239
          %245 = dma.hbm_to_vmem [thread:$0]  %s238, 1024, %s240, %s228, 256, 256, 16
        $region28: #{_olm_forward.1} parent=15 // pred_fallthru
          _
        // Predicated region
        $region29: #{_olm_forward.1} parent=15 // pred_check
          %p246 = pneg %p116
        $region30: #{_olm_forward.1} parent=15 // pred_check_branch
          %248 = sbr.rel (%p246) target = $region32
        $region31: #{_olm_forward.1} parent=15 // pred_region
          %s249 = sand.u32 %s18, 1
          %s250 = scalar_lea.sflag [#allocation5], %s249
          %s251 = sand.u32 %s106, 1
          %s252 = smul.addr %s251, 64
          %s253 = scalar_lea.vmem [#allocation6], %s252
          %s254 = smul.u32 4, %s18
          %s256 = ssub.s32 1024, 1024
          %257 = vsyncadd %s250, %s256
          %s258 = smul.addr %s254, 2
          %s259 = smul.addr %s258, 128
          %s260 = scalar_lea.hbm %s3, %s259
          %s261 = sshll.u32 %s253, 4
          %s262 = int_to_ptr.vmem [resolvable:$true] %s261
          %267 = dma.hbm_to_vmem [thread:$0]  %s260, 1024, %s262, %s250, 256, 256, 16
        $region32: #{_olm_forward.1} parent=15 // pred_fallthru
          _
      $region16: #{_olm_forward.1} parent=5 // pred_fallthru
        _
      %p268 = scmp.le.s32.totalorder 1, %s18
      %p269 = scmp.lt.s32.totalorder %s18, 5
      %p270 = pnand %p268, %p269
      %p271 = pneg %p270
      // Predicated region
      $region33: #{_olm_forward.1} parent=5 // pred_check
        _
      $region34: #{_olm_forward.1} parent=5 // pred_check_branch
        %273 = sbr.rel (%p270) target = $region36
      $region35: #{_olm_forward.1} parent=5 // pred_region
        %s274 = ssub.s32 %s18, 1
        %s275 = sand.u32 %s57, 1
        %s276 = scalar_lea.sflag [#allocation3], %s275
        %s277 = sand.u32 %s57, 1
        %s278 = smul.addr %s277, 64
        %s279 = scalar_lea.vmem [#allocation2], %s278
        // Predicated region
        $region37: #{_olm_forward.1} parent=35 // pred_check
          %p280 = pneg %p70
        $region38: #{_olm_forward.1} parent=35 // pred_check_branch
          %282 = sbr.rel (%p280) target = $region40
        $region39: #{_olm_forward.1} parent=35 // pred_region
          %283 = dma.done %s276, 1024
        $region40: #{_olm_forward.1} parent=35 // pred_fallthru
          _
        %s284 = sand.u32 %s23, 1
        %s285 = scalar_lea.sflag [#allocation5], %s284
        %s286 = sand.u32 %s83, 1
        %s287 = smul.addr %s286, 64
        %s288 = scalar_lea.vmem [#allocation4], %s287
        // Predicated region
        $region41: #{_olm_forward.1} parent=35 // pred_check
          %p289 = pneg %p96
        $region42: #{_olm_forward.1} parent=35 // pred_check_branch
          %291 = sbr.rel (%p289) target = $region44
        $region43: #{_olm_forward.1} parent=35 // pred_region
          %292 = dma.done %s285, 1024
        $region44: #{_olm_forward.1} parent=35 // pred_fallthru
          _
        %s293 = sand.u32 %s23, 1
        %s294 = scalar_lea.sflag [#allocation5], %s293
        %s295 = sand.u32 %s109, 1
        %s296 = smul.addr %s295, 64
        %s297 = scalar_lea.vmem [#allocation6], %s296
        // Predicated region
        $region45: #{_olm_forward.1} parent=35 // pred_check
          %p298 = pneg %p122
        $region46: #{_olm_forward.1} parent=35 // pred_check_branch
          %300 = sbr.rel (%p298) target = $region48
        $region47: #{_olm_forward.1} parent=35 // pred_region
          %301 = dma.done %s294, 1024
        $region48: #{_olm_forward.1} parent=35 // pred_fallthru
          _
        %s302 = smul.u32 4, %s23
        %p303 = scmp.lt.s32.totalorder %s302, 15
        %s304 = scalar_select %p303, %s302, 15
        %s305 = smul.addr %s304, 8
        %s306 = scalar_lea.vmem %s0, %s305
        %p307 = pneg %p44
        %p308 = pneg %p41
        %s309 = sand.u32 %s57, 1
        %s310 = scalar_lea.sflag [#allocation3], %s309
        %s311 = sand.u32 %s57, 1
        %s312 = smul.addr %s311, 64
        %s313 = scalar_lea.vmem [#allocation2], %s312
        %p314 = pneg %p70
        %p315 = pneg %p67
        %s316 = sand.u32 %s23, 1
        %s317 = scalar_lea.sflag [#allocation5], %s316
        %s318 = sand.u32 %s83, 1
        %s319 = smul.addr %s318, 64
        %s320 = scalar_lea.vmem [#allocation4], %s319
        %p321 = pneg %p96
        %p322 = pneg %p93
        %s323 = sand.u32 %s23, 1
        %s324 = scalar_lea.sflag [#allocation5], %s323
        %s325 = sand.u32 %s109, 1
        %s326 = smul.addr %s325, 64
        %s327 = scalar_lea.vmem [#allocation6], %s326
        %p328 = pneg %p122
        %p329 = pneg %p119
        %p330 = pneg %p148
        %p331 = pneg %p145
        %p332 = scmp.lt.s32.totalorder %s23, 3
        %s333 = scalar_select %p332, %s23, 3
        %s334 = scalar_lea.vmem %s4, %s333
        %p335 = pneg %p174
        %p336 = pneg %p171
        %p337 = scmp.lt.s32.totalorder %s23, 3
        %s338 = scalar_select %p337, %s23, 3
        %s339 = smul.addr %s338, 4
        %s340 = scalar_lea.vmem %s5, %s339
        %s341 = smul.u32 4, %s23
        %p342 = scmp.lt.s32.totalorder %s341, 15
        %s343 = scalar_select %p342, %s341, 15
        %s344 = smul.addr %s343, 8
        %s345 = scalar_lea.vmem %s0, %s344
        %s346 = smul.u32 4, %s23
        %s347 = smul.u32 4, %s23
        %s348 = smul.u32 4, %s23
        %s349 = smul.u32 4, %s23
        %p350 = scmp.lt.s32.totalorder %s23, 3
        %s351 = scalar_select %p350, %s23, 3
        %s352 = scalar_lea.vmem %s4, %s351
        %p353 = scmp.lt.s32.totalorder %s23, 3
        %s354 = scalar_select %p353, %s23, 3
        %s355 = smul.addr %s354, 4
        %s356 = scalar_lea.vmem %s5, %s355
        %v357 = vld [vmem:[%s345] sm:$0xff]
        %v358 = vld [vmem:[%s345 + $0x8] sm:$0xff]
        %v359 = vld [vmem:[%s345 + $0x10] sm:$0xff]
        %v360 = vld [vmem:[%s345 + $0x18] sm:$0xff]
        %v361 = vlaneseq
        %v362 = vand.u32 %v361, 127
        %v363 = vadd.s32 %v362, 128
        %364 = vset.pattern.permute.xlu0 0
        %365 = vperm.xlu0 %364, %v357
        %v366 = vpop.permute.xlu0 %365
        %367 = vset.pattern.permute.xlu0 0
        %368 = vperm.xlu0 %367, %v358
        %v369 = vpop.permute.xlu0 %368
        %370 = vset.pattern.permute.xlu0 0
        %371 = vperm.xlu0 %370, %v359
        %v372 = vpop.permute.xlu0 %371
        %373 = vset.pattern.permute.xlu0 0
        %374 = vperm.xlu0 %373, %v360
        %v375 = vpop.permute.xlu0 %374
        %vm376 = vcmp.eq.s32.totalorder %v362, %v366
        %vm377 = vcmp.eq.s32.totalorder %v363, %v366
        %vm378 = vcmp.eq.s32.totalorder %v362, %v369
        %vm379 = vcmp.eq.s32.totalorder %v363, %v369
        %vm380 = vcmp.eq.s32.totalorder %v362, %v372
        %vm381 = vcmp.eq.s32.totalorder %v363, %v372
        %vm382 = vcmp.eq.s32.totalorder %v362, %v375
        %vm383 = vcmp.eq.s32.totalorder %v363, %v375
        %v384 = vld [vmem:[%s279] sm:$0xff]
        %v385 = vld [vmem:[%s279 + $0x8] sm:$0xff]
        %v386 = vld [vmem:[%s279 + $0x10] sm:$0xff]
        %v387 = vld [vmem:[%s279 + $0x18] sm:$0xff]
        %v388 = vld [vmem:[%s279 + $0x20] sm:$0xff]
        %v389 = vld [vmem:[%s279 + $0x28] sm:$0xff]
        %v390 = vld [vmem:[%s279 + $0x30] sm:$0xff]
        %v391 = vld [vmem:[%s279 + $0x38] sm:$0xff]
        %v392 = vmax.f32 %v384, %v385
        %393 = vmax.xlane.f32.xlu0 %v392
        %v394 = vpop.xlane.xlu0 %393
        %v395 = vmax.f32 %v386, %v387
        %396 = vmax.xlane.f32.xlu0 %v395
        %v397 = vpop.xlane.xlu0 %396
        %v398 = vmax.f32 %v388, %v389
        %399 = vmax.xlane.f32.xlu0 %v398
        %v400 = vpop.xlane.xlu0 %399
        %v401 = vmax.f32 %v390, %v391
        %402 = vmax.xlane.f32.xlu0 %v401
        %v403 = vpop.xlane.xlu0 %402
        %v404 = vsub.f32 %v384, %v394
        %v405 = vsub.f32 %v385, %v394
        %v406 = vsub.f32 %v386, %v397
        %v407 = vsub.f32 %v387, %v397
        %v408 = vsub.f32 %v388, %v400
        %v409 = vsub.f32 %v389, %v400
        %v410 = vsub.f32 %v390, %v403
        %v411 = vsub.f32 %v391, %v403
        %v412 = vmul.f32 %v404, 1.442695
        %v413 = vpow.pop %v412
        %v414 = vmul.f32 %v405, 1.442695
        %v415 = vpow.pop %v414
        %v416 = vmul.f32 %v406, 1.442695
        %v417 = vpow.pop %v416
        %v418 = vmul.f32 %v407, 1.442695
        %v419 = vpow.pop %v418
        %v420 = vmul.f32 %v408, 1.442695
        %v421 = vpow.pop %v420
        %v422 = vmul.f32 %v409, 1.442695
        %v423 = vpow.pop %v422
        %v424 = vmul.f32 %v410, 1.442695
        %v425 = vpow.pop %v424
        %v426 = vmul.f32 %v411, 1.442695
        %v427 = vpow.pop %v426
        %v428 = vadd.f32 %v413, %v415
        %429 = vadd.xlane.f32.xlu0 %v428
        %v430 = vpop.xlane.xlu0 %429
        %v431 = vadd.f32 %v417, %v419
        %432 = vadd.xlane.f32.xlu0 %v431
        %v433 = vpop.xlane.xlu0 %432
        %v434 = vadd.f32 %v421, %v423
        %435 = vadd.xlane.f32.xlu0 %v434
        %v436 = vpop.xlane.xlu0 %435
        %v437 = vadd.f32 %v425, %v427
        %438 = vadd.xlane.f32.xlu0 %v437
        %v439 = vpop.xlane.xlu0 %438
        %v440 = vlog2.pop %v430
        %v441 = vmul.f32 %v440, 0.6931472
        %v442 = vlog2.pop %v433
        %v443 = vmul.f32 %v442, 0.6931472
        %v444 = vlog2.pop %v436
        %v445 = vmul.f32 %v444, 0.6931472
        %v446 = vlog2.pop %v439
        %v447 = vmul.f32 %v446, 0.6931472
        %v448 = vadd.f32 %v394, %v441
        %v449 = vadd.f32 %v397, %v443
        %v450 = vadd.f32 %v400, %v445
        %v451 = vadd.f32 %v403, %v447
        %v452 = vsel %vm376, %v384, 0.0
        %v453 = vsel %vm377, %v385, 0.0
        %v454 = vsel %vm378, %v386, 0.0
        %v455 = vsel %vm379, %v387, 0.0
        %v456 = vsel %vm380, %v388, 0.0
        %v457 = vsel %vm381, %v389, 0.0
        %v458 = vsel %vm382, %v390, 0.0
        %v459 = vsel %vm383, %v391, 0.0
        %v460 = vadd.f32 %v452, %v453
        %461 = vadd.xlane.f32.xlu0 %v460
        %v462 = vpop.xlane.xlu0 %461
        %v463 = vadd.f32 %v454, %v455
        %464 = vadd.xlane.f32.xlu0 %v463
        %v465 = vpop.xlane.xlu0 %464
        %v466 = vadd.f32 %v456, %v457
        %467 = vadd.xlane.f32.xlu0 %v466
        %v468 = vpop.xlane.xlu0 %467
        %v469 = vadd.f32 %v458, %v459
        %470 = vadd.xlane.f32.xlu0 %v469
        %v471 = vpop.xlane.xlu0 %470
        %v472 = vmul.f32 %v384, %v384
        %v473 = vmul.f32 %v385, %v385
        %v474 = vmul.f32 %v386, %v386
        %v475 = vmul.f32 %v387, %v387
        %v476 = vmul.f32 %v388, %v388
        %v477 = vmul.f32 %v389, %v389
        %v478 = vmul.f32 %v390, %v390
        %v479 = vmul.f32 %v391, %v391
        %v480 = vadd.f32 %v472, %v473
        %481 = vadd.xlane.f32.xlu0 %v480
        %v482 = vpop.xlane.xlu0 %481
        %v483 = vadd.f32 %v474, %v475
        %484 = vadd.xlane.f32.xlu0 %v483
        %v485 = vpop.xlane.xlu0 %484
        %v486 = vadd.f32 %v476, %v477
        %487 = vadd.xlane.f32.xlu0 %v486
        %v488 = vpop.xlane.xlu0 %487
        %v489 = vadd.f32 %v478, %v479
        %490 = vadd.xlane.f32.xlu0 %v489
        %v491 = vpop.xlane.xlu0 %490
        %v492 = vrsqrt.pop %v482
        %v493 = vmul.f32 %v482, %v492
        %vm494 = vcmp.eq.f32.partialorder %v482, inf
        %v495 = vsel %vm494, %v482, %v493
        %vm496 = vcmp.eq.f32.partialorder %v482, 0.0
        %v497 = vand.u32 %v482, 2147483648
        %v498 = vsel %vm496, %v497, %v495
        %v499 = vrsqrt.pop %v485
        %v500 = vmul.f32 %v485, %v499
        %vm501 = vcmp.eq.f32.partialorder %v485, inf
        %v502 = vsel %vm501, %v485, %v500
        %vm503 = vcmp.eq.f32.partialorder %v485, 0.0
        %v504 = vand.u32 %v485, 2147483648
        %v505 = vsel %vm503, %v504, %v502
        %v506 = vrsqrt.pop %v488
        %v507 = vmul.f32 %v488, %v506
        %vm508 = vcmp.eq.f32.partialorder %v488, inf
        %v509 = vsel %vm508, %v488, %v507
        %vm510 = vcmp.eq.f32.partialorder %v488, 0.0
        %v511 = vand.u32 %v488, 2147483648
        %v512 = vsel %vm510, %v511, %v509
        %v513 = vrsqrt.pop %v491
        %v514 = vmul.f32 %v491, %v513
        %vm515 = vcmp.eq.f32.partialorder %v491, inf
        %v516 = vsel %vm515, %v491, %v514
        %vm517 = vcmp.eq.f32.partialorder %v491, 0.0
        %v518 = vand.u32 %v491, 2147483648
        %v519 = vsel %vm517, %v518, %v516
        %v520 = vsub.f32 %v448, %v462
        %v521 = vsub.f32 %v449, %v465
        %v522 = vsub.f32 %v450, %v468
        %v523 = vsub.f32 %v451, %v471
        %v524 = vadd.f32 %v520, %v521
        %v525 = vadd.f32 %v524, %v522
        %v526 = vadd.f32 %v525, %v523
        %v527 = vrot.slane %v526, 4
        %v528 = vadd.f32 %v526, %v527
        %v529 = vrot.slane %v528, 2
        %v530 = vadd.f32 %v528, %v529
        %v531 = vrot.slane %v530, 1
        %v532 = vadd.f32 %v530, %v531
        %v533 = vld [vmem:[%s288] sm:$0xff]
        %v534 = vld [vmem:[%s288 + $0x8] sm:$0xff]
        %v535 = vld [vmem:[%s288 + $0x10] sm:$0xff]
        %v536 = vld [vmem:[%s288 + $0x18] sm:$0xff]
        %v537 = vld [vmem:[%s288 + $0x20] sm:$0xff]
        %v538 = vld [vmem:[%s288 + $0x28] sm:$0xff]
        %v539 = vld [vmem:[%s288 + $0x30] sm:$0xff]
        %v540 = vld [vmem:[%s288 + $0x38] sm:$0xff]
        %v541 = vmax.f32 %v533, %v534
        %542 = vmax.xlane.f32.xlu0 %v541
        %v543 = vpop.xlane.xlu0 %542
        %v544 = vmax.f32 %v535, %v536
        %545 = vmax.xlane.f32.xlu0 %v544
        %v546 = vpop.xlane.xlu0 %545
        %v547 = vmax.f32 %v537, %v538
        %548 = vmax.xlane.f32.xlu0 %v547
        %v549 = vpop.xlane.xlu0 %548
        %v550 = vmax.f32 %v539, %v540
        %551 = vmax.xlane.f32.xlu0 %v550
        %v552 = vpop.xlane.xlu0 %551
        %v553 = vsub.f32 %v533, %v543
        %v554 = vsub.f32 %v534, %v543
        %v555 = vsub.f32 %v535, %v546
        %v556 = vsub.f32 %v536, %v546
        %v557 = vsub.f32 %v537, %v549
        %v558 = vsub.f32 %v538, %v549
        %v559 = vsub.f32 %v539, %v552
        %v560 = vsub.f32 %v540, %v552
        %v561 = vmul.f32 %v553, 1.442695
        %v562 = vpow.pop %v561
        %v563 = vmul.f32 %v554, 1.442695
        %v564 = vpow.pop %v563
        %v565 = vmul.f32 %v555, 1.442695
        %v566 = vpow.pop %v565
        %v567 = vmul.f32 %v556, 1.442695
        %v568 = vpow.pop %v567
        %v569 = vmul.f32 %v557, 1.442695
        %v570 = vpow.pop %v569
        %v571 = vmul.f32 %v558, 1.442695
        %v572 = vpow.pop %v571
        %v573 = vmul.f32 %v559, 1.442695
        %v574 = vpow.pop %v573
        %v575 = vmul.f32 %v560, 1.442695
        %v576 = vpow.pop %v575
        %v577 = vadd.f32 %v562, %v564
        %578 = vadd.xlane.f32.xlu0 %v577
        %v579 = vpop.xlane.xlu0 %578
        %v580 = vadd.f32 %v566, %v568
        %581 = vadd.xlane.f32.xlu0 %v580
        %v582 = vpop.xlane.xlu0 %581
        %v583 = vadd.f32 %v570, %v572
        %584 = vadd.xlane.f32.xlu0 %v583
        %v585 = vpop.xlane.xlu0 %584
        %v586 = vadd.f32 %v574, %v576
        %587 = vadd.xlane.f32.xlu0 %v586
        %v588 = vpop.xlane.xlu0 %587
        %v589 = vlog2.pop %v579
        %v590 = vmul.f32 %v589, 0.6931472
        %v591 = vlog2.pop %v582
        %v592 = vmul.f32 %v591, 0.6931472
        %v593 = vlog2.pop %v585
        %v594 = vmul.f32 %v593, 0.6931472
        %v595 = vlog2.pop %v588
        %v596 = vmul.f32 %v595, 0.6931472
        %v597 = vadd.f32 %v543, %v590
        %v598 = vadd.f32 %v546, %v592
        %v599 = vadd.f32 %v549, %v594
        %v600 = vadd.f32 %v552, %v596
        %v601 = vsel %vm376, %v533, 0.0
        %v602 = vsel %vm377, %v534, 0.0
        %v603 = vsel %vm378, %v535, 0.0
        %v604 = vsel %vm379, %v536, 0.0
        %v605 = vsel %vm380, %v537, 0.0
        %v606 = vsel %vm381, %v538, 0.0
        %v607 = vsel %vm382, %v539, 0.0
        %v608 = vsel %vm383, %v540, 0.0
        %v609 = vadd.f32 %v601, %v602
        %610 = vadd.xlane.f32.xlu0 %v609
        %v611 = vpop.xlane.xlu0 %610
        %v612 = vadd.f32 %v603, %v604
        %613 = vadd.xlane.f32.xlu0 %v612
        %v614 = vpop.xlane.xlu0 %613
        %v615 = vadd.f32 %v605, %v606
        %616 = vadd.xlane.f32.xlu0 %v615
        %v617 = vpop.xlane.xlu0 %616
        %v618 = vadd.f32 %v607, %v608
        %619 = vadd.xlane.f32.xlu0 %v618
        %v620 = vpop.xlane.xlu0 %619
        %v621 = vmul.f32 %v533, %v533
        %v622 = vmul.f32 %v534, %v534
        %v623 = vmul.f32 %v535, %v535
        %v624 = vmul.f32 %v536, %v536
        %v625 = vmul.f32 %v537, %v537
        %v626 = vmul.f32 %v538, %v538
        %v627 = vmul.f32 %v539, %v539
        %v628 = vmul.f32 %v540, %v540
        %v629 = vadd.f32 %v621, %v622
        %630 = vadd.xlane.f32.xlu0 %v629
        %v631 = vpop.xlane.xlu0 %630
        %v632 = vadd.f32 %v623, %v624
        %633 = vadd.xlane.f32.xlu0 %v632
        %v634 = vpop.xlane.xlu0 %633
        %v635 = vadd.f32 %v625, %v626
        %636 = vadd.xlane.f32.xlu0 %v635
        %v637 = vpop.xlane.xlu0 %636
        %v638 = vadd.f32 %v627, %v628
        %639 = vadd.xlane.f32.xlu0 %v638
        %v640 = vpop.xlane.xlu0 %639
        %v641 = vrsqrt.pop %v631
        %v642 = vmul.f32 %v631, %v641
        %vm643 = vcmp.eq.f32.partialorder %v631, inf
        %v644 = vsel %vm643, %v631, %v642
        %vm645 = vcmp.eq.f32.partialorder %v631, 0.0
        %v646 = vand.u32 %v631, 2147483648
        %v647 = vsel %vm645, %v646, %v644
        %v648 = vrsqrt.pop %v634
        %v649 = vmul.f32 %v634, %v648
        %vm650 = vcmp.eq.f32.partialorder %v634, inf
        %v651 = vsel %vm650, %v634, %v649
        %vm652 = vcmp.eq.f32.partialorder %v634, 0.0
        %v653 = vand.u32 %v634, 2147483648
        %v654 = vsel %vm652, %v653, %v651
        %v655 = vrsqrt.pop %v637
        %v656 = vmul.f32 %v637, %v655
        %vm657 = vcmp.eq.f32.partialorder %v637, inf
        %v658 = vsel %vm657, %v637, %v656
        %vm659 = vcmp.eq.f32.partialorder %v637, 0.0
        %v660 = vand.u32 %v637, 2147483648
        %v661 = vsel %vm659, %v660, %v658
        %v662 = vrsqrt.pop %v640
        %v663 = vmul.f32 %v640, %v662
        %vm664 = vcmp.eq.f32.partialorder %v640, inf
        %v665 = vsel %vm664, %v640, %v663
        %vm666 = vcmp.eq.f32.partialorder %v640, 0.0
        %v667 = vand.u32 %v640, 2147483648
        %v668 = vsel %vm666, %v667, %v665
        %v669 = vsub.f32 %v597, %v611
        %v670 = vsub.f32 %v598, %v614
        %v671 = vsub.f32 %v599, %v617
        %v672 = vsub.f32 %v600, %v620
        %v673 = vadd.f32 %v669, %v670
        %v674 = vadd.f32 %v673, %v671
        %v675 = vadd.f32 %v674, %v672
        %v676 = vrot.slane %v675, 4
        %v677 = vadd.f32 %v675, %v676
        %v678 = vrot.slane %v677, 2
        %v679 = vadd.f32 %v677, %v678
        %v680 = vrot.slane %v679, 1
        %v681 = vadd.f32 %v679, %v680
        %v682 = vld [vmem:[%s297] sm:$0xff]
        %v683 = vld [vmem:[%s297 + $0x8] sm:$0xff]
        %v684 = vld [vmem:[%s297 + $0x10] sm:$0xff]
        %v685 = vld [vmem:[%s297 + $0x18] sm:$0xff]
        %v686 = vld [vmem:[%s297 + $0x20] sm:$0xff]
        %v687 = vld [vmem:[%s297 + $0x28] sm:$0xff]
        %v688 = vld [vmem:[%s297 + $0x30] sm:$0xff]
        %v689 = vld [vmem:[%s297 + $0x38] sm:$0xff]
        %v690 = vmax.f32 %v682, %v683
        %691 = vmax.xlane.f32.xlu0 %v690
        %v692 = vpop.xlane.xlu0 %691
        %v693 = vmax.f32 %v684, %v685
        %694 = vmax.xlane.f32.xlu0 %v693
        %v695 = vpop.xlane.xlu0 %694
        %v696 = vmax.f32 %v686, %v687
        %697 = vmax.xlane.f32.xlu0 %v696
        %v698 = vpop.xlane.xlu0 %697
        %v699 = vmax.f32 %v688, %v689
        %700 = vmax.xlane.f32.xlu0 %v699
        %v701 = vpop.xlane.xlu0 %700
        %v702 = vsub.f32 %v682, %v692
        %v703 = vsub.f32 %v683, %v692
        %v704 = vsub.f32 %v684, %v695
        %v705 = vsub.f32 %v685, %v695
        %v706 = vsub.f32 %v686, %v698
        %v707 = vsub.f32 %v687, %v698
        %v708 = vsub.f32 %v688, %v701
        %v709 = vsub.f32 %v689, %v701
        %v710 = vmul.f32 %v702, 1.442695
        %v711 = vpow.pop %v710
        %v712 = vmul.f32 %v703, 1.442695
        %v713 = vpow.pop %v712
        %v714 = vmul.f32 %v704, 1.442695
        %v715 = vpow.pop %v714
        %v716 = vmul.f32 %v705, 1.442695
        %v717 = vpow.pop %v716
        %v718 = vmul.f32 %v706, 1.442695
        %v719 = vpow.pop %v718
        %v720 = vmul.f32 %v707, 1.442695
        %v721 = vpow.pop %v720
        %v722 = vmul.f32 %v708, 1.442695
        %v723 = vpow.pop %v722
        %v724 = vmul.f32 %v709, 1.442695
        %v725 = vpow.pop %v724
        %v726 = vadd.f32 %v711, %v713
        %727 = vadd.xlane.f32.xlu0 %v726
        %v728 = vpop.xlane.xlu0 %727
        %v729 = vadd.f32 %v715, %v717
        %730 = vadd.xlane.f32.xlu0 %v729
        %v731 = vpop.xlane.xlu0 %730
        %v732 = vadd.f32 %v719, %v721
        %733 = vadd.xlane.f32.xlu0 %v732
        %v734 = vpop.xlane.xlu0 %733
        %v735 = vadd.f32 %v723, %v725
        %736 = vadd.xlane.f32.xlu0 %v735
        %v737 = vpop.xlane.xlu0 %736
        %v738 = vlog2.pop %v728
        %v739 = vmul.f32 %v738, 0.6931472
        %v740 = vlog2.pop %v731
        %v741 = vmul.f32 %v740, 0.6931472
        %v742 = vlog2.pop %v734
        %v743 = vmul.f32 %v742, 0.6931472
        %v744 = vlog2.pop %v737
        %v745 = vmul.f32 %v744, 0.6931472
        %v746 = vadd.f32 %v692, %v739
        %v747 = vadd.f32 %v695, %v741
        %v748 = vadd.f32 %v698, %v743
        %v749 = vadd.f32 %v701, %v745
        %v750 = vsel %vm376, %v682, 0.0
        %v751 = vsel %vm377, %v683, 0.0
        %v752 = vsel %vm378, %v684, 0.0
        %v753 = vsel %vm379, %v685, 0.0
        %v754 = vsel %vm380, %v686, 0.0
        %v755 = vsel %vm381, %v687, 0.0
        %v756 = vsel %vm382, %v688, 0.0
        %v757 = vsel %vm383, %v689, 0.0
        %v758 = vadd.f32 %v750, %v751
        %759 = vadd.xlane.f32.xlu0 %v758
        %v760 = vpop.xlane.xlu0 %759
        %v761 = vadd.f32 %v752, %v753
        %762 = vadd.xlane.f32.xlu0 %v761
        %v763 = vpop.xlane.xlu0 %762
        %v764 = vadd.f32 %v754, %v755
        %765 = vadd.xlane.f32.xlu0 %v764
        %v766 = vpop.xlane.xlu0 %765
        %v767 = vadd.f32 %v756, %v757
        %768 = vadd.xlane.f32.xlu0 %v767
        %v769 = vpop.xlane.xlu0 %768
        %v770 = vmul.f32 %v682, %v682
        %v771 = vmul.f32 %v683, %v683
        %v772 = vmul.f32 %v684, %v684
        %v773 = vmul.f32 %v685, %v685
        %v774 = vmul.f32 %v686, %v686
        %v775 = vmul.f32 %v687, %v687
        %v776 = vmul.f32 %v688, %v688
        %v777 = vmul.f32 %v689, %v689
        %v778 = vadd.f32 %v770, %v771
        %779 = vadd.xlane.f32.xlu0 %v778
        %v780 = vpop.xlane.xlu0 %779
        %v781 = vadd.f32 %v772, %v773
        %782 = vadd.xlane.f32.xlu0 %v781
        %v783 = vpop.xlane.xlu0 %782
        %v784 = vadd.f32 %v774, %v775
        %785 = vadd.xlane.f32.xlu0 %v784
        %v786 = vpop.xlane.xlu0 %785
        %v787 = vadd.f32 %v776, %v777
        %788 = vadd.xlane.f32.xlu0 %v787
        %v789 = vpop.xlane.xlu0 %788
        %v790 = vrsqrt.pop %v780
        %v791 = vmul.f32 %v780, %v790
        %vm792 = vcmp.eq.f32.partialorder %v780, inf
        %v793 = vsel %vm792, %v780, %v791
        %vm794 = vcmp.eq.f32.partialorder %v780, 0.0
        %v795 = vand.u32 %v780, 2147483648
        %v796 = vsel %vm794, %v795, %v793
        %v797 = vrsqrt.pop %v783
        %v798 = vmul.f32 %v783, %v797
        %vm799 = vcmp.eq.f32.partialorder %v783, inf
        %v800 = vsel %vm799, %v783, %v798
        %vm801 = vcmp.eq.f32.partialorder %v783, 0.0
        %v802 = vand.u32 %v783, 2147483648
        %v803 = vsel %vm801, %v802, %v800
        %v804 = vrsqrt.pop %v786
        %v805 = vmul.f32 %v786, %v804
        %vm806 = vcmp.eq.f32.partialorder %v786, inf
        %v807 = vsel %vm806, %v786, %v805
        %vm808 = vcmp.eq.f32.partialorder %v786, 0.0
        %v809 = vand.u32 %v786, 2147483648
        %v810 = vsel %vm808, %v809, %v807
        %v811 = vrsqrt.pop %v789
        %v812 = vmul.f32 %v789, %v811
        %vm813 = vcmp.eq.f32.partialorder %v789, inf
        %v814 = vsel %vm813, %v789, %v812
        %vm815 = vcmp.eq.f32.partialorder %v789, 0.0
        %v816 = vand.u32 %v789, 2147483648
        %v817 = vsel %vm815, %v816, %v814
        %v818 = vsub.f32 %v746, %v760
        %v819 = vsub.f32 %v747, %v763
        %v820 = vsub.f32 %v748, %v766
        %v821 = vsub.f32 %v749, %v769
        %v822 = vadd.f32 %v818, %v819
        %v823 = vadd.f32 %v822, %v820
        %v824 = vadd.f32 %v823, %v821
        %v825 = vrot.slane %v824, 4
        %v826 = vadd.f32 %v824, %v825
        %v827 = vrot.slane %v826, 2
        %v828 = vadd.f32 %v826, %v827
        %v829 = vrot.slane %v828, 1
        %v830 = vadd.f32 %v828, %v829
        %vm831 = vcmask 7168
        %v832 = vsel %vm831, %v532, %v681
        %vm833 = vcmask 15360
        %v834 = vsel %vm833, %v832, %v830
        %vm835 = vcmask 16384
        %836 = vst.msk [vmem:[%s352] sm:$0x1] %vm835, %v834
        %v837 = vsel %vm831, %v498, %v647
        %v838 = vsel %vm831, %v505, %v654
        %v839 = vsel %vm831, %v512, %v661
        %v840 = vsel %vm831, %v519, %v668
        %v841 = vsel %vm833, %v837, %v796
        %v842 = vsel %vm833, %v838, %v803
        %v843 = vsel %vm833, %v839, %v810
        %v844 = vsel %vm833, %v840, %v817
        %845 = vxpose.xlu0.b32.start [1/16] %v841, 128
        %846 = vxpose.xlu0.b32.cont [2/16] %v842, 128
        %847 = vxpose.xlu0.b32.cont [3/16] %v843, 128
        %848 = vxpose.xlu0.b32.cont [4/16] %v844, 128
        %849 = vxpose.xlu0.b32.cont [5/16] 0.0, 128
        %850 = vxpose.xlu0.b32.cont [6/16] 0.0, 128
        %851 = vxpose.xlu0.b32.cont [7/16] 0.0, 128
        %852 = vxpose.xlu0.b32.cont [8/16] 0.0, 128
        %853 = vxpose.xlu0.b32.cont [9/16] 0.0, 128
        %854 = vxpose.xlu0.b32.cont [10/16] 0.0, 128
        %855 = vxpose.xlu0.b32.cont [11/16] 0.0, 128
        %856 = vxpose.xlu0.b32.cont [12/16] 0.0, 128
        %857 = vxpose.xlu0.b32.cont [13/16] 0.0, 128
        %858 = vxpose.xlu0.b32.cont [14/16] 0.0, 128
        %859 = vxpose.xlu0.b32.cont [15/16] 0.0, 128
        %860 = vxpose.xlu0.b32.end [16/16] 0.0, 128
        %v861 = vpop.trf.xlu0
        %v862 = vpop.trf.xlu0
        %v863 = vpop.trf.xlu0
        %v864 = vpop.trf.xlu0
        %v865 = vpop.trf.xlu0
        %v866 = vpop.trf.xlu0
        %v867 = vpop.trf.xlu0
        %v868 = vpop.trf.xlu0
        %v869 = vpop.trf.xlu0
        %v870 = vpop.trf.xlu0
        %v871 = vpop.trf.xlu0
        %v872 = vpop.trf.xlu0
        %v873 = vpop.trf.xlu0
        %v874 = vpop.trf.xlu0
        %v875 = vpop.trf.xlu0
        %v876 = vpop.trf.xlu0
        %vm877 = vcmask 256000
        %878 = vst.msk [vmem:[%s356] sm:$0x7] %vm877, %v861
        %p879 = scmp.lt.s32.totalorder %s23, 3
        %s880 = scalar_select %p879, %s23, 3
        %s881 = scalar_lea.vmem %s4, %s880
        %p882 = scmp.lt.s32.totalorder %s23, 3
        %s883 = scalar_select %p882, %s23, 3
        %s884 = smul.addr %s883, 4
        %s885 = scalar_lea.vmem %s5, %s884
        // Predicated region
        $region49: #{_olm_forward.1} parent=35 // pred_check
          %p886 = pneg %p145
        $region50: #{_olm_forward.1} parent=35 // pred_check_branch
          %888 = sbr.rel (%p886) target = $region52
        $region51: #{_olm_forward.1} parent=35 // pred_region
          _
        $region52: #{_olm_forward.1} parent=35 // pred_fallthru
          _
        // Predicated region
        $region53: #{_olm_forward.1} parent=35 // pred_check
          %p889 = pneg %p171
        $region54: #{_olm_forward.1} parent=35 // pred_check_branch
          %891 = sbr.rel (%p889) target = $region56
        $region55: #{_olm_forward.1} parent=35 // pred_region
          _
        $region56: #{_olm_forward.1} parent=35 // pred_fallthru
          _
      $region36: #{_olm_forward.1} parent=5 // pred_fallthru
        _
      %p892 = scmp.le.s32.totalorder 2, %s18
      // Predicated region
      $region57: #{_olm_forward.1} parent=5 // pred_check
        %p893 = pneg %p892
      $region58: #{_olm_forward.1} parent=5 // pred_check_branch
        %895 = sbr.rel (%p893) target = $region60
      $region59: #{_olm_forward.1} parent=5 // pred_region
        %s896 = ssub.s32 %s18, 2
        // Predicated region
        $region61: #{_olm_forward.1} parent=59 // pred_check
          %p897 = pneg %p151
        $region62: #{_olm_forward.1} parent=59 // pred_check_branch
          %899 = sbr.rel (%p897) target = $region64
        $region63: #{_olm_forward.1} parent=59 // pred_region
          %p900 = scmp.lt.s32.totalorder %s24, 3
          %s901 = scalar_select %p900, %s24, 3
          %s902 = scalar_lea.vmem %s4, %s901
        $region64: #{_olm_forward.1} parent=59 // pred_fallthru
          _
        // Predicated region
        $region65: #{_olm_forward.1} parent=59 // pred_check
          %p903 = pneg %p177
        $region66: #{_olm_forward.1} parent=59 // pred_check_branch
          %905 = sbr.rel (%p903) target = $region68
        $region67: #{_olm_forward.1} parent=59 // pred_region
          %p906 = scmp.lt.s32.totalorder %s24, 3
          %s907 = scalar_select %p906, %s24, 3
          %s908 = smul.addr %s907, 4
          %s909 = scalar_lea.vmem %s5, %s908
        $region68: #{_olm_forward.1} parent=59 // pred_fallthru
          _
      $region60: #{_olm_forward.1} parent=5 // pred_fallthru
        _
    $region6: #{_olm_forward.1} parent=1 // loop_footer
      %s22 = sadd.s32 1, %s18
    $region7: #{_olm_forward.1} parent=1 // loop_footer_branch
      %17 = sbr.rel target = $region3
    $region8: #{_olm_forward.1} parent=1 // loop_exit
      _
    %910 = vsyncpa [#allocation3], 1
    %s911 = scalar_lea.sflag [#allocation3], 1
    %912 = vsyncpa %s911, 1
    %913 = vsyncpa [#allocation5], 1
    %s914 = scalar_lea.sflag [#allocation5], 1
    %915 = vsyncpa %s914, 1

</llo_original>
